<compile_context>
chip_gen: v7x
topology: tpu7x:2x2x1
jax: 0.10.0
libtpu: 0.0.40
codegen_flags: <defaults>
</compile_context>

<pallas_src>
import jax
import jax.numpy as jnp
from jax.experimental import pallas as pl
from jax.experimental.pallas import tpu as pltpu


def _identity_kernel(x_ref, o_ref):
    # Elementwise identity on the current VMEM tile.
    o_ref[...] = x_ref[...]


_LANE = 128
_SUBLANE = 8
_MAX_COLS = 4096                       # lane-dense cap for the last axis
_BLOCK_BYTES = 8 * 1024 * 1024         # ~8 MiB/block; 2 ops x 2 bufs = 32 MiB
_VMEM_LIMIT = 48 * 1024 * 1024         # < 64 MiB physical on v7x; fine on v5e/v6e


def _pick_2d_layout(total):
    """Pick (rows, cols): cols a large multiple of 128 dividing `total`,
    preferring rows that are a multiple of 8 (full vreg sublane use)."""
    best_any = None
    c = min(_MAX_COLS, (total // _LANE) * _LANE)
    while c >= _LANE:
        if total % c == 0:
            rows = total // c
            if rows % _SUBLANE == 0:
                return rows, c
            if best_any is None:
                best_any = (rows, c)
        c -= _LANE
    return best_any  # None if total is not a multiple of 128


def custom_arc_efficientnet_forward(x):
    """Pallas implementation of CustomArc_efficientnet.forward (identity)."""
    orig_shape = x.shape
    total = int(x.size)
    if total == 0:
        return x

    itemsize = jnp.dtype(x.dtype).itemsize
    cost = pl.CostEstimate(flops=0, transcendentals=0,
                           bytes_accessed=2 * total * itemsize)
    cparams = pltpu.CompilerParams(
        dimension_semantics=("parallel",),
        vmem_limit_bytes=_VMEM_LIMIT,
    )

    layout = _pick_2d_layout(total) if total >= _LANE else None

    if layout is not None:
        # --- lane-dense 2-D path (element count is a multiple of 128) ---
        rows, cols = layout
        # Big blocks to amortize per-step overhead ...
        tile_rows = max(_SUBLANE,
                        (_BLOCK_BYTES // (cols * itemsize)) // _SUBLANE * _SUBLANE)
        # ... but keep >= 2 grid steps when possible so the "parallel" axis can
        # shard across both v7x TensorCores.
        if rows > _SUBLANE:
            half = max(_SUBLANE, pl.cdiv(pl.cdiv(rows, 2), _SUBLANE) * _SUBLANE)
            tile_rows = min(tile_rows, half)
        tile_rows = min(tile_rows, rows)
        # (8, 128) rule: block rows must be a multiple of 8 or the full extent.
        if tile_rows % _SUBLANE != 0:
            tile_rows = rows

        x2 = x.reshape(rows, cols)
        out2 = pl.pallas_call(
            _identity_kernel,
            out_shape=jax.ShapeDtypeStruct((rows, cols), x.dtype),
            grid_spec=pltpu.PrefetchScalarGridSpec(
                num_scalar_prefetch=0,
                grid=(pl.cdiv(rows, tile_rows),),
                in_specs=[pl.BlockSpec((tile_rows, cols), lambda i: (i, 0))],
                out_specs=pl.BlockSpec((tile_rows, cols), lambda i: (i, 0)),
            ),
            compiler_params=cparams,
            cost_estimate=cost,
        )(x2)
        return out2.reshape(orig_shape)

    # --- fallback: element count not a multiple of 128 (or tiny) ---
    # Tiled, lane-aligned 1-D copy; Pallas masks the partial last block, so
    # even very large inputs never exceed the scoped-VMEM limit.
    x1 = x.reshape(total)
    if total <= _LANE:
        chunk = total                                   # single tiny block
    else:
        chunk = min(_BLOCK_BYTES // itemsize, total)
        chunk = max(_LANE, (chunk // _LANE) * _LANE)    # lane-aligned chunk

    out1 = pl.pallas_call(
        _identity_kernel,
        out_shape=jax.ShapeDtypeStruct((total,), x.dtype),
        grid_spec=pltpu.PrefetchScalarGridSpec(
            num_scalar_prefetch=0,
            grid=(pl.cdiv(total, chunk),),
            in_specs=[pl.BlockSpec((chunk,), lambda i: (i,))],
            out_specs=pl.BlockSpec((chunk,), lambda i: (i,)),
        ),
        compiler_params=cparams,
        cost_estimate=cost,
    )(x1)
    return out1.reshape(orig_shape)


if __name__ == "__main__":
    key = jax.random.PRNGKey(0)
    # Small NCHW input consistent with an image-model forward signature.
    x = jax.random.normal(key, (2, 4, 16, 16), dtype=jnp.float32)

    y = custom_arc_efficientnet_forward(x)
    y = jax.block_until_ready(y)

    assert y.shape == x.shape and y.dtype == x.dtype
    assert bool(jnp.all(y == x))
    print("KERNEL_OK")
</pallas_src>

<mosaic_0001>
module attributes {stable_mosaic.version = 11 : i64} {
  func.func @_identity_kernel(%arg0: i32, %arg1: memref<8x256xf32, #tpu.memory_space<vmem>>, %arg2: memref<8x256xf32, #tpu.memory_space<vmem>>) attributes {dimension_semantics = [#tpu.dimension_semantics<parallel>], iteration_bounds = array<i64: 1>, scalar_prefetch = 0 : i64, scratch_operands = 0 : i64, tpu.core_type = #tpu.core_type<tc>, window_params = [{transform_indices = @transform_0, window_bounds = array<i64: 8, 256>}, {transform_indices = @transform_1, window_bounds = array<i64: 8, 256>}]} {
    %c0 = arith.constant 0 : index
    %c0_0 = arith.constant 0 : index
    %0 = vector.load %arg1[%c0, %c0_0] : memref<8x256xf32, #tpu.memory_space<vmem>>, vector<8x256xf32>
    %c0_1 = arith.constant 0 : index
    %c0_2 = arith.constant 0 : index
    %1 = vector.load %arg2[%c0_1, %c0_2] : memref<8x256xf32, #tpu.memory_space<vmem>>, vector<8x256xf32>
    tpu.vector_store %arg2[%c0_1, %c0_2], %0 {strides = array<i32>} : memref<8x256xf32, #tpu.memory_space<vmem>>, vector<8x256xf32>,
    return
  }
  func.func @transform_0(%arg0: i32) -> (i32, i32) {
    %c0_i32 = arith.constant 0 : i32
    %c0_i32_0 = arith.constant 0 : i32
    return %arg0, %c0_i32 : i32, i32
  }
  func.func @transform_1(%arg0: i32) -> (i32, i32) {
    %c0_i32 = arith.constant 0 : i32
    %c0_i32_0 = arith.constant 0 : i32
    return %arg0, %c0_i32 : i32, i32
  }
}

</mosaic_0001>

<llo_original>
// kernel: tpu_custom_call.1
$region0: #{tpu_custom_call.1}
  #allocation0 [shape = 'u32[]', space=smem, size = 0x4, offset = 0x4, fixed_abs, tag = 'smem constant byte address 0x4 - core index']
  #allocation1 [shape = 'u32[144,128]{1,0:T(1,128)}', space=vmem, size = 0x12000, scoped, tag = 'internal scratch']
  %s0 = inlined_call_operand.hbm [shape: f32[8,256], index: 0, kind: input, shape index: {}]
  %s1 = inlined_call_operand.hbm [shape: f32[8,256], index: 1, kind: output, shape index: {}]
  %s2 = sld [smem:[#allocation0]]
  $region18: #{tpu_custom_call.1} parent=0
    _
  %s4 = ssub.s32 1, %s2
  %s5 = scalar_select 0, %s4, %s2
  $region1: #{tpu_custom_call.1} parent=0
    #allocation2 [shape = 'u8[8192]{0}', space=vmem, size = 0x2000, scoped, tag = 'input window, operand 0, single buffered']
    #allocation3 [shape = 's32[1]{0}', space=sflag, size = 0x4, scoped, tag = 'scoped memory for tpu_custom_call.1']
    #allocation4 [shape = 's32[1]{0}', space=sflag, size = 0x4, scoped, tag = 'scoped memory for tpu_custom_call.1']
    #allocation5 [shape = 'u8[8192]{0}', space=vmem, size = 0x2000, scoped, tag = 'output window, operand 0, single buffered']
    %6 = vsyncpa [#allocation3], 0
    %7 = vsyncpa [#allocation4], 0
    // Predicated region
    $region2: #{tpu_custom_call.1} parent=1 // pred_check
      _
    $region3: #{tpu_custom_call.1} parent=1 // pred_check_branch
      %9 = sbr.rel (0) target = $region5
    $region4: #{tpu_custom_call.1} parent=1 // pred_region
      %s11 = ssub.s32 256, 256
      %12 = vsyncadd [#allocation3], %s11
      %s14 = sshll.u32 [#allocation2], 4
      %s15 = int_to_ptr.vmem [resolvable:$true] %s14
      %17 = dma.hbm_to_vmem [thread:$0]  %s0, 256, %s15, [#allocation3]
    $region5: #{tpu_custom_call.1} parent=1 // pred_fallthru
      _
    // Predicated region
    $region6: #{tpu_custom_call.1} parent=1 // pred_check
      _
    $region7: #{tpu_custom_call.1} parent=1 // pred_check_branch
      %19 = sbr.rel (0) target = $region9
    $region8: #{tpu_custom_call.1} parent=1 // pred_region
      %20 = dma.done [#allocation3], 256
    $region9: #{tpu_custom_call.1} parent=1 // pred_fallthru
      _
    %v21 = vld [vmem:[#allocation2] sm:$0xff]
    %v22 = vld [vmem:[#allocation2 + $0x8] sm:$0xff]
    %23 = vst [vmem:[#allocation5] sm:$0xff] %v21
    %24 = vst [vmem:[#allocation5 + $0x8] sm:$0xff] %v22
    // Predicated region
    $region10: #{tpu_custom_call.1} parent=1 // pred_check
      _
    $region11: #{tpu_custom_call.1} parent=1 // pred_check_branch
      %26 = sbr.rel (0) target = $region13
    $region12: #{tpu_custom_call.1} parent=1 // pred_region
      %s28 = ssub.s32 256, 256
      %29 = vsyncadd [#allocation4], %s28
      %s31 = sshll.u32 [#allocation5], 4
      %s32 = int_to_ptr.vmem [resolvable:$true] %s31
      %34 = dma.vmem_to_hbm [thread:$0]  %s32, 256, %s1, [#allocation4]
    $region13: #{tpu_custom_call.1} parent=1 // pred_fallthru
      _
    // Predicated region
    $region14: #{tpu_custom_call.1} parent=1 // pred_check
      _
    $region15: #{tpu_custom_call.1} parent=1 // pred_check_branch
      %36 = sbr.rel (0) target = $region17
    $region16: #{tpu_custom_call.1} parent=1 // pred_region
      %37 = dma.done [#allocation4], 256
    $region17: #{tpu_custom_call.1} parent=1 // pred_fallthru
      _
    %38 = vsyncpa [#allocation3], 1
    %39 = vsyncpa [#allocation4], 1

</llo_original>
